<compile_context>
chip_gen: v7x
topology: tpu7x:2x2x1
jax: 0.10.0
libtpu: 0.0.40
codegen_flags: <defaults>
</compile_context>

<pallas_src>
import math
import functools

import jax
import jax.numpy as jnp
from jax import lax
from jax.experimental import pallas as pl
from jax.experimental.pallas import tpu as pltpu


# ---------------------------------------------------------------------------
# Generation-aware VMEM budget / tile preferences
# ---------------------------------------------------------------------------
def _tpu_vmem_capacity_bytes():
    try:
        info = pltpu.get_tpu_info()
        cap = getattr(info, "vmem_capacity_bytes", 0)
        if cap:
            return int(cap)
    except Exception:
        pass
    return 64 * 1024 * 1024  # conservative fallback = v7x per-TensorCore VMEM


_VMEM_CAP = _tpu_vmem_capacity_bytes()
_BIG_VMEM = _VMEM_CAP >= 100 * 1024 * 1024            # v5e / v6e (128 MiB)
VMEM_LIMIT = (64 if _BIG_VMEM else 28) * 1024 * 1024  # leave headroom on v7x

# Tile-size preference lists (largest tile that divides the dim wins).
TM_PREFS = (512, 256, 128, 64, 32, 16, 8) if _BIG_VMEM else (256, 128, 64, 32, 16, 8)
TN_PREFS = (512, 256, 128) if _BIG_VMEM else (256, 128)
TK_PREFS = (512, 256, 128, 64, 32, 16, 8) if _BIG_VMEM else (256, 128, 64, 32, 16, 8)
TQ_PREFS = (256, 128, 64, 32, 16, 8) if _BIG_VMEM else (128, 64, 32, 16, 8)


def _pick_tile(dim, prefs):
    """Largest preferred tile that divides dim, else the full dim."""
    # TODO(synk): add a padding / residual-tile path for dims nothing divides.
    for p in prefs:
        if dim % p == 0:
            return p
    return dim


def _cparams(sems):
    return pltpu.CompilerParams(dimension_semantics=sems,
                                vmem_limit_bytes=VMEM_LIMIT)


_TRANS_B = (((1,), (1,)), ((), ()))   # x[(m,k)] . w[(n,k)]^T  (MXU-native trans-B)


# ---------------------------------------------------------------------------
# Kernel 1: fused Q/K/V projections  (three x @ W.T + b in one pallas_call)
#   grid = (M/tm, D_out/tn, D_in/tk); K-reduction on the last ("arbitrary") axis.
#   With no scratch refs, the (f32) output blocks themselves are the accumulators.
# ---------------------------------------------------------------------------
def _qkv_proj_kernel(xq_ref, xk_ref, xv_ref, wq_ref, wk_ref, wv_ref,
                     bq_ref, bk_ref, bv_ref, oq_ref, ok_ref, ov_ref,
                     *acc, q_scale):
    use_scratch = len(acc) == 3
    aq, ak, av = acc if use_scratch else (oq_ref, ok_ref, ov_ref)
    kk = pl.program_id(2)

    @pl.when(kk == 0)
    def _():
        # Initialize the accumulators with the broadcast biases (biases stay f32).
        aq[...] = jnp.broadcast_to(bq_ref[...].astype(jnp.float32), aq.shape)
        ak[...] = jnp.broadcast_to(bk_ref[...].astype(jnp.float32), ak.shape)
        av[...] = jnp.broadcast_to(bv_ref[...].astype(jnp.float32), av.shape)

    aq[...] += lax.dot_general(xq_ref[...], wq_ref[...], _TRANS_B,
                               preferred_element_type=jnp.float32)
    ak[...] += lax.dot_general(xk_ref[...], wk_ref[...], _TRANS_B,
                               preferred_element_type=jnp.float32)
    av[...] += lax.dot_general(xv_ref[...], wv_ref[...], _TRANS_B,
                               preferred_element_type=jnp.float32)

    @pl.when(kk == pl.num_programs(2) - 1)
    def _():
        # 1/sqrt(d_tensor) folded into the q projection: once per output element
        # instead of once per KV step in the flash inner loop.
        oq_ref[...] = (aq[...] * q_scale).astype(oq_ref.dtype)
        if use_scratch:
            ok_ref[...] = ak[...].astype(ok_ref.dtype)
            ov_ref[...] = av[...].astype(ov_ref.dtype)


def pallas_qkv_proj(q, k, v, wq, bq, wk, bk, wv, bv, *, q_scale, out_dtype):
    """q,k,v: [B, L, D_in]; w*: [D_out, D_in] (PyTorch layout, NOT transposed);
    b*: [D_out]."""
    B, L, D_in = q.shape
    D_out = wq.shape[0]
    M = B * L
    tm = _pick_tile(M, TM_PREFS)
    tn = _pick_tile(D_out, TN_PREFS)
    tk = _pick_tile(D_in, TK_PREFS)

    q2, k2, v2 = (t.reshape(M, D_in) for t in (q, k, v))
    # Biases stay f32: they are added into the f32 accumulators.
    bq2, bk2, bv2 = (b.reshape(1, D_out).astype(jnp.float32) for b in (bq, bk, bv))

    x_spec = pl.BlockSpec((tm, tk), lambda i, j, kk: (i, kk))
    w_spec = pl.BlockSpec((tn, tk), lambda i, j, kk: (j, kk))
    b_spec = pl.BlockSpec((1, tn), lambda i, j, kk: (0, j))
    o_spec = pl.BlockSpec((tm, tn), lambda i, j, kk: (i, j))

    direct = jnp.dtype(out_dtype) == jnp.dtype(jnp.float32)
    scratch = [] if direct else [pltpu.VMEM((tm, tn), jnp.float32)] * 3

    outs = pl.pallas_call(
        functools.partial(_qkv_proj_kernel, q_scale=q_scale),
        out_shape=[jax.ShapeDtypeStruct((M, D_out), out_dtype)] * 3,
        grid=(M // tm, D_out // tn, D_in // tk),
        in_specs=[x_spec] * 3 + [w_spec] * 3 + [b_spec] * 3,
        out_specs=[o_spec] * 3,
        scratch_shapes=scratch,
        compiler_params=_cparams(("parallel", "parallel", "arbitrary")),
    )(q2, k2, v2, wq, wk, wv, bq2, bk2, bv2)

    return tuple(o.reshape(B, L, D_out) for o in outs)


# ---------------------------------------------------------------------------
# Kernel 2: generic tiled linear  y = x @ W.T + b   (used for w_concat)
# ---------------------------------------------------------------------------
def _linear_kernel(x_ref, w_ref, b_ref, o_ref, *acc):
    acc_ref = acc[0] if acc else o_ref      # f32 outputs accumulate in-place
    kk = pl.program_id(2)

    @pl.when(kk == 0)
    def _():
        acc_ref[...] = jnp.broadcast_to(b_ref[...].astype(jnp.float32),
                                        acc_ref.shape)

    acc_ref[...] += lax.dot_general(x_ref[...], w_ref[...], _TRANS_B,
                                    preferred_element_type=jnp.float32)

    if acc:
        @pl.when(kk == pl.num_programs(2) - 1)
        def _():
            o_ref[...] = acc_ref[...].astype(o_ref.dtype)


def pallas_linear(x, w, b, *, out_dtype=None):
    """x: [..., D_in]; w: [D_out, D_in] (PyTorch layout, NOT transposed); b: [D_out]."""
    *lead, D_in = x.shape
    D_out = w.shape[0]
    M = int(math.prod(lead))
    out_dtype = x.dtype if out_dtype is None else out_dtype
    x2 = x.reshape(M, D_in)

    tm = _pick_tile(M, TM_PREFS)
    tn = _pick_tile(D_out, TN_PREFS)
    tk = _pick_tile(D_in, TK_PREFS)

    direct = jnp.dtype(out_dtype) == jnp.dtype(jnp.float32)
    scratch = [] if direct else [pltpu.VMEM((tm, tn), jnp.float32)]

    out = pl.pallas_call(
        _linear_kernel,
        out_shape=jax.ShapeDtypeStruct((M, D_out), out_dtype),
        grid=(M // tm, D_out // tn, D_in // tk),
        in_specs=[
            pl.BlockSpec((tm, tk), lambda i, j, kk: (i, kk)),
            pl.BlockSpec((tn, tk), lambda i, j, kk: (j, kk)),
            pl.BlockSpec((1, tn), lambda i, j, kk: (0, j)),
        ],
        out_specs=pl.BlockSpec((tm, tn), lambda i, j, kk: (i, j)),
        scratch_shapes=scratch,
        compiler_params=_cparams(("parallel", "parallel", "arbitrary")),
    )(x2, w, b.reshape(1, D_out).astype(jnp.float32))

    return out.reshape(*lead, D_out)


# ---------------------------------------------------------------------------
# Kernel 3: flash-style scaled dot-product attention on the [B, L, H, dt]
# layout (all heads per grid step, no wrapper transposes, no (L,L) score
# matrix in HBM). The softmax scale is already folded into the q projection.
# ---------------------------------------------------------------------------
def _flash_sdpa_kernel(q_ref, k_ref, v_ref, o_ref, m_sc, l_sc, acc_sc):
    kv = pl.program_id(2)

    @pl.when(kv == 0)
    def _():
        m_sc[...] = jnp.full(m_sc.shape, -jnp.inf, m_sc.dtype)
        l_sc[...] = jnp.zeros(l_sc.shape, l_sc.dtype)
        acc_sc[...] = jnp.zeros(acc_sc.shape, acc_sc.dtype)

    # Blocks arrive as [L-tile, H, dt]; put the head axis first for the batched
    # MXU contractions. This is a cheap VMEM-resident major-dim shuffle, not an
    # HBM pass like the previous wrapper-side transposes.
    q = jnp.transpose(q_ref[0], (1, 0, 2))   # (H, tq, dt)  (scale pre-folded)
    k = jnp.transpose(k_ref[0], (1, 0, 2))   # (H, tkv, dt)
    v = jnp.transpose(v_ref[0], (1, 0, 2))   # (H, tkv, dt)

    # s[h,q,k] = sum_d q[h,q,d] * k[h,k,d]   (trans-B contraction, no k.T)
    s = jnp.einsum('hqd,hkd->hqk', q, k,
                   preferred_element_type=jnp.float32)           # (H, tq, tkv)

    m_prev = m_sc[...]
    m_new = jnp.maximum(m_prev, jnp.max(s, axis=-1, keepdims=True))
    alpha = jnp.exp(m_prev - m_new)
    p = jnp.exp(s - m_new)

    l_sc[...] = alpha * l_sc[...] + jnp.sum(p, axis=-1, keepdims=True)
    pv = jnp.einsum('hqk,hkd->hqd', p.astype(v.dtype), v,
                    preferred_element_type=jnp.float32)          # (H, tq, dt)
    acc_sc[...] = alpha * acc_sc[...] + pv
    m_sc[...] = m_new

    @pl.when(kv == pl.num_programs(2) - 1)
    def _():
        inv = pl.reciprocal(l_sc[...], approx=False)   # exact; runs once per q tile
        out = acc_sc[...] * inv                        # (H, tq, dt)
        o_ref[0] = jnp.transpose(out, (1, 0, 2)).astype(o_ref.dtype)  # (tq, H, dt)


def pallas_sdpa(q4, k4, v4):
    """q4,k4,v4: [B, L, H, d_tensor] (softmax scale pre-folded into q)
    -> out [B, L, H, d_tensor]  (mask=None path)."""
    B, L, H, dt = q4.shape
    tq = _pick_tile(L, TQ_PREFS)
    tkv = _pick_tile(L, TQ_PREFS)

    q_spec = pl.BlockSpec((1, tq, H, dt), lambda b, qi, ki: (b, qi, 0, 0))
    # TODO(synk): if profiling shows exposed K/V DMA for small d_tensor, add
    # pipeline_mode=pl.Buffered(3) on the K/V specs.
    kv_spec = pl.BlockSpec((1, tkv, H, dt), lambda b, qi, ki: (b, ki, 0, 0))
    o_spec = pl.BlockSpec((1, tq, H, dt), lambda b, qi, ki: (b, qi, 0, 0))

    return pl.pallas_call(
        _flash_sdpa_kernel,
        out_shape=jax.ShapeDtypeStruct((B, L, H, dt), q4.dtype),
        grid=(B, L // tq, L // tkv),
        in_specs=[q_spec, kv_spec, kv_spec],
        out_specs=o_spec,
        scratch_shapes=[
            # NOTE: last dim 1 pads to 128 lanes; kept for layout-stable keepdims
            # math (same footprint as the lane-replicated buffers used by the
            # reference flash kernels).
            pltpu.VMEM((H, tq, 1), jnp.float32),    # running max
            pltpu.VMEM((H, tq, 1), jnp.float32),    # running sum
            pltpu.VMEM((H, tq, dt), jnp.float32),   # output accumulator
        ],
        compiler_params=_cparams(("parallel", "parallel", "arbitrary")),
    )(q4, k4, v4)


# ---------------------------------------------------------------------------
# MultiHeadAttention forward (glue in plain JAX, hot path in Pallas)
# ---------------------------------------------------------------------------
def multi_head_attention(params, q, k, v, n_head, compute_dtype=None):
    """Forward pass of MultiHeadAttention (mask=None path).

    compute_dtype: optional MXU operand dtype (e.g. jnp.bfloat16). Accumulation,
    biases and softmax state stay f32; the result keeps the input dtype.
    """
    B, L, d_model = q.shape
    d_tensor = d_model // n_head
    out_dtype = q.dtype
    cdt = out_dtype if compute_dtype is None else jnp.dtype(compute_dtype)

    qc, kc, vc = (t.astype(cdt) for t in (q, k, v))
    wq, wk, wv, wc = (params[n].astype(cdt)
                      for n in ("w_q", "w_k", "w_v", "w_concat"))

    # Fused Q/K/V projections; 1/sqrt(d_tensor) is folded into the q output.
    q_p, k_p, v_p = pallas_qkv_proj(
        qc, kc, vc,
        wq, params["b_q"], wk, params["b_k"], wv, params["b_v"],
        q_scale=1.0 / math.sqrt(d_tensor), out_dtype=cdt)

    # Head split is a FREE reshape (no transpose): [B, L, D] -> [B, L, H, dt].
    def split4(t):
        return t.reshape(B, L, n_head, d_tensor)

    out4 = pallas_sdpa(split4(q_p), split4(k_p), split4(v_p))  # [B, L, H, dt]
    out = out4.reshape(B, L, d_model)                          # free head concat

    # Final projection, back to the caller's dtype.
    return pallas_linear(out, wc, params["b_concat"], out_dtype=out_dtype)


# Pure-JAX reference (mirrors the PyTorch module) for a correctness check.
def reference_mha(params, q, k, v, n_head):
    B, L, D = q.shape
    d_tensor = D // n_head

    def lin(x, w, b):
        return x @ w.T + b

    def split(t):
        return t.reshape(B, L, n_head, d_tensor).transpose(0, 2, 1, 3)

    q_p, k_p, v_p = (lin(q, params["w_q"], params["b_q"]),
                     lin(k, params["w_k"], params["b_k"]),
                     lin(v, params["w_v"], params["b_v"]))
    qh, kh, vh = split(q_p), split(k_p), split(v_p)
    score = (qh @ kh.transpose(0, 1, 3, 2)) / math.sqrt(d_tensor)
    score = jax.nn.softmax(score, axis=-1)
    out = score @ vh
    out = out.transpose(0, 2, 1, 3).reshape(B, L, D)
    return lin(out, params["w_concat"], params["b_concat"])


if __name__ == "__main__":
    B, L, d_model, n_head = 2, 8, 32, 4

    key = jax.random.PRNGKey(0)
    keys = jax.random.split(key, 12)

    bound = 1.0 / math.sqrt(d_model)   # PyTorch Linear default init range

    def uw(k_):
        return jax.random.uniform(k_, (d_model, d_model), jnp.float32, -bound, bound)

    def ub(k_):
        return jax.random.uniform(k_, (d_model,), jnp.float32, -bound, bound)

    params = {
        "w_q": uw(keys[0]), "b_q": ub(keys[1]),
        "w_k": uw(keys[2]), "b_k": ub(keys[3]),
        "w_v": uw(keys[4]), "b_v": ub(keys[5]),
        "w_concat": uw(keys[6]), "b_concat": ub(keys[7]),
    }

    q = jax.random.normal(keys[8], (B, L, d_model), jnp.float32)
    k = jax.random.normal(keys[9], (B, L, d_model), jnp.float32)
    v = jax.random.normal(keys[10], (B, L, d_model), jnp.float32)

    ref = reference_mha(params, q, k, v, n_head)

    # f32 path (exact reciprocal, f32 accumulation end-to-end).
    out = jax.block_until_ready(multi_head_attention(params, q, k, v, n_head))
    assert out.shape == (B, L, d_model)
    # Tolerance covers TPU default (bf16-pass) MXU precision and the
    # flash-vs-direct softmax accumulation-order differences; the approx
    # reciprocal from the previous version is gone.
    assert jnp.allclose(out, ref, atol=2e-3, rtol=2e-3), "f32 mismatch vs reference"

    # bf16 MXU-operand path (f32 accumulation / softmax state, f32 result dtype).
    out_bf16 = jax.block_until_ready(
        multi_head_attention(params, q, k, v, n_head, compute_dtype=jnp.bfloat16))
    assert out_bf16.shape == (B, L, d_model)
    assert out_bf16.dtype == out.dtype
    assert jnp.allclose(out_bf16, ref, atol=1e-1, rtol=1e-1), "bf16 mismatch vs reference"

    # TODO(synk): mask=None path only; the masked_fill variant is not needed for
    # the module's default forward call.
    print("KERNEL_OK")
</pallas_src>

<mosaic_0001>
module attributes {stable_mosaic.version = 11 : i64} {
  func.func @_qkv_proj_kernel(%arg0: i32, %arg1: i32, %arg2: i32, %arg3: memref<16x32xf32, #tpu.memory_space<vmem>>, %arg4: memref<16x32xf32, #tpu.memory_space<vmem>>, %arg5: memref<16x32xf32, #tpu.memory_space<vmem>>, %arg6: memref<32x32xf32, #tpu.memory_space<vmem>>, %arg7: memref<32x32xf32, #tpu.memory_space<vmem>>, %arg8: memref<32x32xf32, #tpu.memory_space<vmem>>, %arg9: memref<1x32xf32, #tpu.memory_space<vmem>>, %arg10: memref<1x32xf32, #tpu.memory_space<vmem>>, %arg11: memref<1x32xf32, #tpu.memory_space<vmem>>, %arg12: memref<16x32xf32, #tpu.memory_space<vmem>>, %arg13: memref<16x32xf32, #tpu.memory_space<vmem>>, %arg14: memref<16x32xf32, #tpu.memory_space<vmem>>) attributes {dimension_semantics = [#tpu.dimension_semantics<parallel>, #tpu.dimension_semantics<parallel>, #tpu.dimension_semantics<arbitrary>], iteration_bounds = array<i64: 1, 1, 1>, scalar_prefetch = 0 : i64, scratch_operands = 0 : i64, tpu.core_type = #tpu.core_type<tc>, window_params = [{transform_indices = @transform_0, window_bounds = array<i64: 16, 32>}, {transform_indices = @transform_1, window_bounds = array<i64: 16, 32>}, {transform_indices = @transform_2, window_bounds = array<i64: 16, 32>}, {transform_indices = @transform_3, window_bounds = array<i64: 32, 32>}, {transform_indices = @transform_4, window_bounds = array<i64: 32, 32>}, {transform_indices = @transform_5, window_bounds = array<i64: 32, 32>}, {transform_indices = @transform_6, window_bounds = array<i64: 1, 32>}, {transform_indices = @transform_7, window_bounds = array<i64: 1, 32>}, {transform_indices = @transform_8, window_bounds = array<i64: 1, 32>}, {transform_indices = @transform_9, window_bounds = array<i64: 16, 32>}, {transform_indices = @transform_10, window_bounds = array<i64: 16, 32>}, {transform_indices = @transform_11, window_bounds = array<i64: 16, 32>}]} {
    %c0_i32 = arith.constant 0 : i32
    %0 = arith.cmpi eq, %arg2, %c0_i32 : i32
    %1 = arith.extui %0 : i1 to i32
    %c0_i32_0 = arith.constant 0 : i32
    %2 = arith.cmpi ne, %1, %c0_i32_0 : i32
    scf.if %2 {
      %c0_28 = arith.constant 0 : index
      %c0_29 = arith.constant 0 : index
      %24 = vector.load %arg9[%c0_28, %c0_29] : memref<1x32xf32, #tpu.memory_space<vmem>>, vector<1x32xf32>
      %25 = vector.shape_cast %24 : vector<1x32xf32> to vector<1x32xf32>
      %26 = vector.broadcast %25 : vector<1x32xf32> to vector<16x32xf32>
      %c0_30 = arith.constant 0 : index
      %c0_31 = arith.constant 0 : index
      %27 = vector.load %arg12[%c0_30, %c0_31] : memref<16x32xf32, #tpu.memory_space<vmem>>, vector<16x32xf32>
      tpu.vector_store %arg12[%c0_30, %c0_31], %26 {strides = array<i32>} : memref<16x32xf32, #tpu.memory_space<vmem>>, vector<16x32xf32>,
      %c0_32 = arith.constant 0 : index
      %c0_33 = arith.constant 0 : index
      %28 = vector.load %arg10[%c0_32, %c0_33] : memref<1x32xf32, #tpu.memory_space<vmem>>, vector<1x32xf32>
      %29 = vector.shape_cast %28 : vector<1x32xf32> to vector<1x32xf32>
      %30 = vector.broadcast %29 : vector<1x32xf32> to vector<16x32xf32>
      %c0_34 = arith.constant 0 : index
      %c0_35 = arith.constant 0 : index
      %31 = vector.load %arg13[%c0_34, %c0_35] : memref<16x32xf32, #tpu.memory_space<vmem>>, vector<16x32xf32>
      tpu.vector_store %arg13[%c0_34, %c0_35], %30 {strides = array<i32>} : memref<16x32xf32, #tpu.memory_space<vmem>>, vector<16x32xf32>,
      %c0_36 = arith.constant 0 : index
      %c0_37 = arith.constant 0 : index
      %32 = vector.load %arg11[%c0_36, %c0_37] : memref<1x32xf32, #tpu.memory_space<vmem>>, vector<1x32xf32>
      %33 = vector.shape_cast %32 : vector<1x32xf32> to vector<1x32xf32>
      %34 = vector.broadcast %33 : vector<1x32xf32> to vector<16x32xf32>
      %c0_38 = arith.constant 0 : index
      %c0_39 = arith.constant 0 : index
      %35 = vector.load %arg14[%c0_38, %c0_39] : memref<16x32xf32, #tpu.memory_space<vmem>>, vector<16x32xf32>
      tpu.vector_store %arg14[%c0_38, %c0_39], %34 {strides = array<i32>} : memref<16x32xf32, #tpu.memory_space<vmem>>, vector<16x32xf32>,
    } else {
    }
    %c0 = arith.constant 0 : index
    %c0_1 = arith.constant 0 : index
    %3 = vector.load %arg12[%c0, %c0_1] : memref<16x32xf32, #tpu.memory_space<vmem>>, vector<16x32xf32>
    %c0_2 = arith.constant 0 : index
    %c0_3 = arith.constant 0 : index
    %4 = vector.load %arg3[%c0_2, %c0_3] : memref<16x32xf32, #tpu.memory_space<vmem>>, vector<16x32xf32>
    %c0_4 = arith.constant 0 : index
    %c0_5 = arith.constant 0 : index
    %5 = vector.load %arg6[%c0_4, %c0_5] : memref<32x32xf32, #tpu.memory_space<vmem>>, vector<32x32xf32>
    %cst = arith.constant dense<0.000000e+00> : vector<16x32xf32>
    %6 = tpu.matmul %4, %5, %cst {dimension_numbers = #tpu.dot_dimension_numbers<[1], [1], [0], [0], [0, 0, 1, 0], [], []>} : vector<16x32xf32>, vector<32x32xf32>, vector<16x32xf32> -> vector<16x32xf32>
    %7 = arith.addf %3, %6 : vector<16x32xf32>
    %c0_6 = arith.constant 0 : index
    %c0_7 = arith.constant 0 : index
    %8 = vector.load %arg12[%c0_6, %c0_7] : memref<16x32xf32, #tpu.memory_space<vmem>>, vector<16x32xf32>
    tpu.vector_store %arg12[%c0_6, %c0_7], %7 {strides = array<i32>} : memref<16x32xf32, #tpu.memory_space<vmem>>, vector<16x32xf32>,
    %c0_8 = arith.constant 0 : index
    %c0_9 = arith.constant 0 : index
    %9 = vector.load %arg13[%c0_8, %c0_9] : memref<16x32xf32, #tpu.memory_space<vmem>>, vector<16x32xf32>
    %c0_10 = arith.constant 0 : index
    %c0_11 = arith.constant 0 : index
    %10 = vector.load %arg4[%c0_10, %c0_11] : memref<16x32xf32, #tpu.memory_space<vmem>>, vector<16x32xf32>
    %c0_12 = arith.constant 0 : index
    %c0_13 = arith.constant 0 : index
    %11 = vector.load %arg7[%c0_12, %c0_13] : memref<32x32xf32, #tpu.memory_space<vmem>>, vector<32x32xf32>
    %cst_14 = arith.constant dense<0.000000e+00> : vector<16x32xf32>
    %12 = tpu.matmul %10, %11, %cst_14 {dimension_numbers = #tpu.dot_dimension_numbers<[1], [1], [0], [0], [0, 0, 1, 0], [], []>} : vector<16x32xf32>, vector<32x32xf32>, vector<16x32xf32> -> vector<16x32xf32>
    %13 = arith.addf %9, %12 : vector<16x32xf32>
    %c0_15 = arith.constant 0 : index
    %c0_16 = arith.constant 0 : index
    %14 = vector.load %arg13[%c0_15, %c0_16] : memref<16x32xf32, #tpu.memory_space<vmem>>, vector<16x32xf32>
    tpu.vector_store %arg13[%c0_15, %c0_16], %13 {strides = array<i32>} : memref<16x32xf32, #tpu.memory_space<vmem>>, vector<16x32xf32>,
    %c0_17 = arith.constant 0 : index
    %c0_18 = arith.constant 0 : index
    %15 = vector.load %arg14[%c0_17, %c0_18] : memref<16x32xf32, #tpu.memory_space<vmem>>, vector<16x32xf32>
    %c0_19 = arith.constant 0 : index
    %c0_20 = arith.constant 0 : index
    %16 = vector.load %arg5[%c0_19, %c0_20] : memref<16x32xf32, #tpu.memory_space<vmem>>, vector<16x32xf32>
    %c0_21 = arith.constant 0 : index
    %c0_22 = arith.constant 0 : index
    %17 = vector.load %arg8[%c0_21, %c0_22] : memref<32x32xf32, #tpu.memory_space<vmem>>, vector<32x32xf32>
    %cst_23 = arith.constant dense<0.000000e+00> : vector<16x32xf32>
    %18 = tpu.matmul %16, %17, %cst_23 {dimension_numbers = #tpu.dot_dimension_numbers<[1], [1], [0], [0], [0, 0, 1, 0], [], []>} : vector<16x32xf32>, vector<32x32xf32>, vector<16x32xf32> -> vector<16x32xf32>
    %19 = arith.addf %15, %18 : vector<16x32xf32>
    %c0_24 = arith.constant 0 : index
    %c0_25 = arith.constant 0 : index
    %20 = vector.load %arg14[%c0_24, %c0_25] : memref<16x32xf32, #tpu.memory_space<vmem>>, vector<16x32xf32>
    tpu.vector_store %arg14[%c0_24, %c0_25], %19 {strides = array<i32>} : memref<16x32xf32, #tpu.memory_space<vmem>>, vector<16x32xf32>,
    %c0_i32_26 = arith.constant 0 : i32
    %21 = arith.cmpi eq, %arg2, %c0_i32_26 : i32
    %22 = arith.extui %21 : i1 to i32
    %c0_i32_27 = arith.constant 0 : i32
    %23 = arith.cmpi ne, %22, %c0_i32_27 : i32
    scf.if %23 {
      %c0_28 = arith.constant 0 : index
      %c0_29 = arith.constant 0 : index
      %24 = vector.load %arg12[%c0_28, %c0_29] : memref<16x32xf32, #tpu.memory_space<vmem>>, vector<16x32xf32>
      %cst_30 = arith.constant 0.353553385 : f32
      %25 = vector.broadcast %cst_30 : f32 to vector<16x32xf32>
      %26 = arith.mulf %24, %25 : vector<16x32xf32>
      %c0_31 = arith.constant 0 : index
      %c0_32 = arith.constant 0 : index
      %27 = vector.load %arg12[%c0_31, %c0_32] : memref<16x32xf32, #tpu.memory_space<vmem>>, vector<16x32xf32>
      tpu.vector_store %arg12[%c0_31, %c0_32], %26 {strides = array<i32>} : memref<16x32xf32, #tpu.memory_space<vmem>>, vector<16x32xf32>,
    } else {
    }
    return
  }
  func.func @transform_0(%arg0: i32, %arg1: i32, %arg2: i32) -> (i32, i32) {
    %c0_i32 = arith.constant 0 : i32
    return %arg0, %arg2 : i32, i32
  }
  func.func @transform_1(%arg0: i32, %arg1: i32, %arg2: i32) -> (i32, i32) {
    %c0_i32 = arith.constant 0 : i32
    return %arg0, %arg2 : i32, i32
  }
  func.func @transform_2(%arg0: i32, %arg1: i32, %arg2: i32) -> (i32, i32) {
    %c0_i32 = arith.constant 0 : i32
    return %arg0, %arg2 : i32, i32
  }
  func.func @transform_3(%arg0: i32, %arg1: i32, %arg2: i32) -> (i32, i32) {
    %c0_i32 = arith.constant 0 : i32
    return %arg1, %arg2 : i32, i32
  }
  func.func @transform_4(%arg0: i32, %arg1: i32, %arg2: i32) -> (i32, i32) {
    %c0_i32 = arith.constant 0 : i32
    return %arg1, %arg2 : i32, i32
  }
  func.func @transform_5(%arg0: i32, %arg1: i32, %arg2: i32) -> (i32, i32) {
    %c0_i32 = arith.constant 0 : i32
    return %arg1, %arg2 : i32, i32
  }
  func.func @transform_6(%arg0: i32, %arg1: i32, %arg2: i32) -> (i32, i32) {
    %c0_i32 = arith.constant 0 : i32
    %c0_i32_0 = arith.constant 0 : i32
    return %c0_i32, %arg1 : i32, i32
  }
  func.func @transform_7(%arg0: i32, %arg1: i32, %arg2: i32) -> (i32, i32) {
    %c0_i32 = arith.constant 0 : i32
    %c0_i32_0 = arith.constant 0 : i32
    return %c0_i32, %arg1 : i32, i32
  }
  func.func @transform_8(%arg0: i32, %arg1: i32, %arg2: i32) -> (i32, i32) {
    %c0_i32 = arith.constant 0 : i32
    %c0_i32_0 = arith.constant 0 : i32
    return %c0_i32, %arg1 : i32, i32
  }
  func.func @transform_9(%arg0: i32, %arg1: i32, %arg2: i32) -> (i32, i32) {
    %c0_i32 = arith.constant 0 : i32
    return %arg0, %arg1 : i32, i32
  }
  func.func @transform_10(%arg0: i32, %arg1: i32, %arg2: i32) -> (i32, i32) {
    %c0_i32 = arith.constant 0 : i32
    return %arg0, %arg1 : i32, i32
  }
  func.func @transform_11(%arg0: i32, %arg1: i32, %arg2: i32) -> (i32, i32) {
    %c0_i32 = arith.constant 0 : i32
    return %arg0, %arg1 : i32, i32
  }
}

</mosaic_0001>

<llo_original>
// kernel: tpu_custom_call.1
$region0: #{tpu_custom_call.1}
  #allocation0 [shape = 'u32[]', space=smem, size = 0x4, offset = 0x4, fixed_abs, tag = 'smem constant byte address 0x4 - core index']
  #allocation1 [shape = 'u32[144,128]{1,0:T(1,128)}', space=vmem, size = 0x12000, scoped, tag = 'internal scratch']
  %s0 = inlined_call_operand.hbm [shape: f32[16,32], index: 0, kind: input, shape index: {}]
  %s1 = inlined_call_operand.hbm [shape: f32[16,32], index: 1, kind: input, shape index: {}]
  %s2 = inlined_call_operand.hbm [shape: f32[16,32], index: 2, kind: input, shape index: {}]
  %s3 = inlined_call_operand.hbm [shape: f32[32,32], index: 3, kind: input, shape index: {}]
  %s4 = inlined_call_operand.hbm [shape: f32[32,32], index: 4, kind: input, shape index: {}]
  %s5 = inlined_call_operand.hbm [shape: f32[32,32], index: 5, kind: input, shape index: {}]
  %s6 = inlined_call_operand.vmem [shape: f32[1,32], index: 6, kind: input, shape index: {}]
  %s7 = inlined_call_operand.vmem [shape: f32[1,32], index: 7, kind: input, shape index: {}]
  %s8 = inlined_call_operand.vmem [shape: f32[1,32], index: 8, kind: input, shape index: {}]
  %s9 = inlined_call_operand.hbm [shape: f32[16,32], index: 9, kind: output, shape index: {0}]
  %s10 = inlined_call_operand.hbm [shape: f32[16,32], index: 10, kind: output, shape index: {1}]
  %s11 = inlined_call_operand.hbm [shape: f32[16,32], index: 11, kind: output, shape index: {2}]
  %12 = xla_tuple %s9, %s10, %s11
  %s13 = sld [smem:[#allocation0]]
  $region94: #{tpu_custom_call.1} parent=0
    _
  %s15 = ssub.s32 1, %s13
  %s16 = scalar_select 0, %s15, %s13
  $region1: #{tpu_custom_call.1} parent=0
    #allocation2 [shape = 'u8[8192]{0}', space=vmem, size = 0x2000, scoped, tag = 'input window, operand 0, single buffered']
    #allocation3 [shape = 's32[1]{0}', space=sflag, size = 0x4, scoped, tag = 'scoped memory for tpu_custom_call.1']
    #allocation4 [shape = 's32[1]{0}', space=sflag, size = 0x4, scoped, tag = 'scoped memory for tpu_custom_call.1']
    #allocation5 [shape = 'u8[8192]{0}', space=vmem, size = 0x2000, scoped, tag = 'input window, operand 1, single buffered']
    #allocation6 [shape = 's32[1]{0}', space=sflag, size = 0x4, scoped, tag = 'scoped memory for tpu_custom_call.1']
    #allocation7 [shape = 'u8[8192]{0}', space=vmem, size = 0x2000, scoped, tag = 'input window, operand 2, single buffered']
    #allocation8 [shape = 'u8[16384]{0}', space=vmem, size = 0x4000, scoped, tag = 'input window, operand 3, single buffered']
    #allocation9 [shape = 's32[1]{0}', space=sflag, size = 0x4, scoped, tag = 'scoped memory for tpu_custom_call.1']
    #allocation10 [shape = 'u8[16384]{0}', space=vmem, size = 0x4000, scoped, tag = 'input window, operand 4, single buffered']
    #allocation11 [shape = 'u8[16384]{0}', space=vmem, size = 0x4000, scoped, tag = 'input window, operand 5, single buffered']
    #allocation12 [shape = 's32[1]{0}', space=sflag, size = 0x4, scoped, tag = 'scoped memory for tpu_custom_call.1']
    #allocation13 [shape = 'u8[8192]{0}', space=vmem, size = 0x2000, scoped, tag = 'output window, operand 0, single buffered']
    #allocation14 [shape = 'u8[8192]{0}', space=vmem, size = 0x2000, scoped, tag = 'output window, operand 1, single buffered']
    #allocation15 [shape = 's32[1]{0}', space=sflag, size = 0x4, scoped, tag = 'scoped memory for tpu_custom_call.1']
    #allocation16 [shape = 'u8[8192]{0}', space=vmem, size = 0x2000, scoped, tag = 'output window, operand 2, single buffered']
    %17 = vsyncpa [#allocation3], 0
    %18 = vsyncpa [#allocation6], 0
    %19 = vsyncpa [#allocation9], 0
    %20 = vsyncpa [#allocation12], 0
    %21 = vsyncpa [#allocation4], 0
    %22 = vsyncpa [#allocation15], 0
    // Predicated region
    $region2: #{tpu_custom_call.1} parent=1 // pred_check
      _
    $region3: #{tpu_custom_call.1} parent=1 // pred_check_branch
      %24 = sbr.rel (0) target = $region5
    $region4: #{tpu_custom_call.1} parent=1 // pred_region
      %s26 = ssub.s32 256, 256
      %27 = vsyncadd [#allocation3], %s26
      %s28 = sshll.u32 [#allocation2], 4
      %s29 = int_to_ptr.vmem [resolvable:$true] %s28
      %34 = dma.hbm_to_vmem [thread:$0]  %s0, 256, %s29, [#allocation3], 128, 128, 8
    $region5: #{tpu_custom_call.1} parent=1 // pred_fallthru
      _
    // Predicated region
    $region6: #{tpu_custom_call.1} parent=1 // pred_check
      _
    $region7: #{tpu_custom_call.1} parent=1 // pred_check_branch
      %36 = sbr.rel (0) target = $region9
    $region8: #{tpu_custom_call.1} parent=1 // pred_region
      %s38 = ssub.s32 256, 256
      %39 = vsyncadd [#allocation6], %s38
      %s40 = sshll.u32 [#allocation5], 4
      %s41 = int_to_ptr.vmem [resolvable:$true] %s40
      %46 = dma.hbm_to_vmem [thread:$0]  %s1, 256, %s41, [#allocation6], 128, 128, 8
    $region9: #{tpu_custom_call.1} parent=1 // pred_fallthru
      _
    // Predicated region
    $region10: #{tpu_custom_call.1} parent=1 // pred_check
      _
    $region11: #{tpu_custom_call.1} parent=1 // pred_check_branch
      %48 = sbr.rel (0) target = $region13
    $region12: #{tpu_custom_call.1} parent=1 // pred_region
      %s50 = ssub.s32 256, 256
      %51 = vsyncadd [#allocation6], %s50
      %s52 = sshll.u32 [#allocation7], 4
      %s53 = int_to_ptr.vmem [resolvable:$true] %s52
      %58 = dma.hbm_to_vmem [thread:$0]  %s2, 256, %s53, [#allocation6], 128, 128, 8
    $region13: #{tpu_custom_call.1} parent=1 // pred_fallthru
      _
    // Predicated region
    $region14: #{tpu_custom_call.1} parent=1 // pred_check
      _
    $region15: #{tpu_custom_call.1} parent=1 // pred_check_branch
      %60 = sbr.rel (0) target = $region17
    $region16: #{tpu_custom_call.1} parent=1 // pred_region
      %s62 = ssub.s32 512, 512
      %63 = vsyncadd [#allocation9], %s62
      %s64 = sshll.u32 [#allocation8], 4
      %s65 = int_to_ptr.vmem [resolvable:$true] %s64
      %70 = dma.hbm_to_vmem [thread:$0]  %s3, 512, %s65, [#allocation9], 128, 128, 8
    $region17: #{tpu_custom_call.1} parent=1 // pred_fallthru
      _
    // Predicated region
    $region18: #{tpu_custom_call.1} parent=1 // pred_check
      _
    $region19: #{tpu_custom_call.1} parent=1 // pred_check_branch
      %72 = sbr.rel (0) target = $region21
    $region20: #{tpu_custom_call.1} parent=1 // pred_region
      %s74 = ssub.s32 512, 512
      %75 = vsyncadd [#allocation9], %s74
      %s76 = sshll.u32 [#allocation10], 4
      %s77 = int_to_ptr.vmem [resolvable:$true] %s76
      %82 = dma.hbm_to_vmem [thread:$0]  %s4, 512, %s77, [#allocation9], 128, 128, 8
    $region21: #{tpu_custom_call.1} parent=1 // pred_fallthru
      _
    // Predicated region
    $region22: #{tpu_custom_call.1} parent=1 // pred_check
      _
    $region23: #{tpu_custom_call.1} parent=1 // pred_check_branch
      %84 = sbr.rel (0) target = $region25
    $region24: #{tpu_custom_call.1} parent=1 // pred_region
      %s86 = ssub.s32 512, 512
      %87 = vsyncadd [#allocation12], %s86
      %s88 = sshll.u32 [#allocation11], 4
      %s89 = int_to_ptr.vmem [resolvable:$true] %s88
      %94 = dma.hbm_to_vmem [thread:$0]  %s5, 512, %s89, [#allocation12], 128, 128, 8
    $region25: #{tpu_custom_call.1} parent=1 // pred_fallthru
      _
    // Predicated region
    $region26: #{tpu_custom_call.1} parent=1 // pred_check
      _
    $region27: #{tpu_custom_call.1} parent=1 // pred_check_branch
      %96 = sbr.rel (0) target = $region29
    $region28: #{tpu_custom_call.1} parent=1 // pred_region
      _
    $region29: #{tpu_custom_call.1} parent=1 // pred_fallthru
      _
    // Predicated region
    $region30: #{tpu_custom_call.1} parent=1 // pred_check
      _
    $region31: #{tpu_custom_call.1} parent=1 // pred_check_branch
      %98 = sbr.rel (0) target = $region33
    $region32: #{tpu_custom_call.1} parent=1 // pred_region
      _
    $region33: #{tpu_custom_call.1} parent=1 // pred_fallthru
      _
    // Predicated region
    $region34: #{tpu_custom_call.1} parent=1 // pred_check
      _
    $region35: #{tpu_custom_call.1} parent=1 // pred_check_branch
      %100 = sbr.rel (0) target = $region37
    $region36: #{tpu_custom_call.1} parent=1 // pred_region
      _
    $region37: #{tpu_custom_call.1} parent=1 // pred_fallthru
      _
    // Predicated region
    $region38: #{tpu_custom_call.1} parent=1 // pred_check
      _
    $region39: #{tpu_custom_call.1} parent=1 // pred_check_branch
      %102 = sbr.rel (0) target = $region41
    $region40: #{tpu_custom_call.1} parent=1 // pred_region
      %103 = dma.done [#allocation3], 256
    $region41: #{tpu_custom_call.1} parent=1 // pred_fallthru
      _
    // Predicated region
    $region42: #{tpu_custom_call.1} parent=1 // pred_check
      _
    $region43: #{tpu_custom_call.1} parent=1 // pred_check_branch
      %105 = sbr.rel (0) target = $region45
    $region44: #{tpu_custom_call.1} parent=1 // pred_region
      %106 = dma.done [#allocation6], 256
    $region45: #{tpu_custom_call.1} parent=1 // pred_fallthru
      _
    // Predicated region
    $region46: #{tpu_custom_call.1} parent=1 // pred_check
      _
    $region47: #{tpu_custom_call.1} parent=1 // pred_check_branch
      %108 = sbr.rel (0) target = $region49
    $region48: #{tpu_custom_call.1} parent=1 // pred_region
      %109 = dma.done [#allocation6], 256
    $region49: #{tpu_custom_call.1} parent=1 // pred_fallthru
      _
    // Predicated region
    $region50: #{tpu_custom_call.1} parent=1 // pred_check
      _
    $region51: #{tpu_custom_call.1} parent=1 // pred_check_branch
      %111 = sbr.rel (0) target = $region53
    $region52: #{tpu_custom_call.1} parent=1 // pred_region
      %112 = dma.done [#allocation9], 512
    $region53: #{tpu_custom_call.1} parent=1 // pred_fallthru
      _
    // Predicated region
    $region54: #{tpu_custom_call.1} parent=1 // pred_check
      _
    $region55: #{tpu_custom_call.1} parent=1 // pred_check_branch
      %114 = sbr.rel (0) target = $region57
    $region56: #{tpu_custom_call.1} parent=1 // pred_region
      %115 = dma.done [#allocation9], 512
    $region57: #{tpu_custom_call.1} parent=1 // pred_fallthru
      _
    // Predicated region
    $region58: #{tpu_custom_call.1} parent=1 // pred_check
      _
    $region59: #{tpu_custom_call.1} parent=1 // pred_check_branch
      %117 = sbr.rel (0) target = $region61
    $region60: #{tpu_custom_call.1} parent=1 // pred_region
      %118 = dma.done [#allocation12], 512
    $region61: #{tpu_custom_call.1} parent=1 // pred_fallthru
      _
    %p119 = scmp.eq.s32.totalorder 0, 0
    // Predicated region
    $region62: #{tpu_custom_call.1} parent=1 // pred_check
      %p120 = pneg %p119
    $region63: #{tpu_custom_call.1} parent=1 // pred_check_branch
      %122 = sbr.rel (%p120) target = $region65
    $region64: #{tpu_custom_call.1} parent=1 // pred_region
      %v123 = vld [vmem:[%s6] sm:$0x1]
      %v125 = vlaneseq
      %v126 = vshrl.u32 %v125, 7
      %v127 = vsub.s32 0, %v126
      %v128 = vrot.slane %v123, %v127
      %vm130 = vcmask 261120
      %131 = vst.msk [vmem:[#allocation13] sm:$0xff] %vm130, %v128
      %132 = vst.msk [vmem:[#allocation13 + $0x8] sm:$0xff] %vm130, %v128
      %v133 = vld [vmem:[%s7] sm:$0x1]
      %v135 = vlaneseq
      %v136 = vshrl.u32 %v135, 7
      %v137 = vsub.s32 0, %v136
      %v138 = vrot.slane %v133, %v137
      %140 = vst.msk [vmem:[#allocation14] sm:$0xff] %vm130, %v138
      %141 = vst.msk [vmem:[#allocation14 + $0x8] sm:$0xff] %vm130, %v138
      %v142 = vld [vmem:[%s8] sm:$0x1]
      %v144 = vlaneseq
      %v145 = vshrl.u32 %v144, 7
      %v146 = vsub.s32 0, %v145
      %v147 = vrot.slane %v142, %v146
      %149 = vst.msk [vmem:[#allocation16] sm:$0xff] %vm130, %v147
      %150 = vst.msk [vmem:[#allocation16 + $0x8] sm:$0xff] %vm130, %v147
    $region65: #{tpu_custom_call.1} parent=1 // pred_fallthru
      _
    %v151 = vld [vmem:[#allocation13] sm:$0xff]
    %v152 = vld [vmem:[#allocation13 + $0x8] sm:$0xff]
    %v153 = vld [vmem:[#allocation2] sm:$0xff]
    %v154 = vld [vmem:[#allocation2 + $0x8] sm:$0xff]
    %v155 = vld [vmem:[#allocation8] sm:$0xff]
    %v156 = vld [vmem:[#allocation8 + $0x8] sm:$0xff]
    %v157 = vld [vmem:[#allocation8 + $0x10] sm:$0xff]
    %v158 = vld [vmem:[#allocation8 + $0x18] sm:$0xff]
    %vm159 = vcmask 261120
    %v161 = vsel %vm159, %v153, 0
    %v164 = vsel %vm159, %v154, 0
    %v167 = vsel %vm159, %v155, 0
    %v170 = vsel %vm159, %v156, 0
    %v173 = vsel %vm159, %v157, 0
    %v176 = vsel %vm159, %v158, 0
    %178 = vmatprep.subr.mxu0 0.0
    %179 = vmatpush1.xpose.msra.mxu0 %v167
    %180 = vmatprep.subr.mxu0 0.0
    %181 = vmatpush1.xpose.msra.mxu0 %v170
    %182 = vmatprep.subr.mxu0 0.0
    %183 = vmatpush1.xpose.msra.mxu0 %v173
    %184 = vmatprep.subr.mxu0 0.0
    %185 = vmatpush1.xpose.msra.mxu0 %v176
    %186 = vmatprep.subr.mxu0 0.0
    %187 = vmatpush1.xpose.msra.mxu0 0.0
    %188 = vmatprep.subr.mxu0 0.0
    %189 = vmatpush1.xpose.msra.mxu0 0.0
    %190 = vmatprep.subr.mxu0 0.0
    %191 = vmatpush1.xpose.msra.mxu0 0.0
    %192 = vmatprep.subr.mxu0 0.0
    %193 = vmatpush1.xpose.msra.mxu0 0.0
    %194 = vmatprep.subr.mxu0 0.0
    %195 = vmatpush1.xpose.msra.mxu0 0.0
    %196 = vmatprep.subr.mxu0 0.0
    %197 = vmatpush1.xpose.msra.mxu0 0.0
    %198 = vmatprep.subr.mxu0 0.0
    %199 = vmatpush1.xpose.msra.mxu0 0.0
    %200 = vmatprep.subr.mxu0 0.0
    %201 = vmatpush1.xpose.msra.mxu0 0.0
    %202 = vmatprep.subr.mxu0 0.0
    %203 = vmatpush1.xpose.msra.mxu0 0.0
    %204 = vmatprep.subr.mxu0 0.0
    %205 = vmatpush1.xpose.msra.mxu0 0.0
    %206 = vmatprep.subr.mxu0 0.0
    %207 = vmatpush1.xpose.msra.mxu0 0.0
    %208 = vmatprep.subr.mxu0 0.0
    %209 = vmatpush1.xpose.msra.mxu0 0.0
    %210 = vmatprep.subr.mxu0 0.0
    %211 = vmatpush1.xpose.msra.mxu0 0.0
    %212 = vmatprep.subr.mxu0 0.0
    %213 = vmatpush1.xpose.msra.mxu0 0.0
    %214 = vmatprep.subr.mxu0 0.0
    %215 = vmatpush1.xpose.msra.mxu0 0.0
    %216 = vmatprep.subr.mxu0 0.0
    %217 = vmatpush1.xpose.msra.mxu0 0.0
    %218 = vmatprep.subr.mxu0 0.0
    %219 = vmatpush1.xpose.msra.mxu0 0.0
    %220 = vmatprep.subr.mxu0 0.0
    %221 = vmatpush1.xpose.msra.mxu0 0.0
    %222 = vmatprep.subr.mxu0 0.0
    %223 = vmatpush1.xpose.msra.mxu0 0.0
    %224 = vmatprep.subr.mxu0 0.0
    %225 = vmatpush1.xpose.msra.mxu0 0.0
    %226 = vmatprep.subr.mxu0 0.0
    %227 = vmatpush1.xpose.msra.mxu0 0.0
    %228 = vmatprep.subr.mxu0 0.0
    %229 = vmatpush1.xpose.msra.mxu0 0.0
    %230 = vmatprep.subr.mxu0 0.0
    %231 = vmatpush1.xpose.msra.mxu0 0.0
    %232 = vmatprep.subr.mxu0 0.0
    %233 = vmatpush1.xpose.msra.mxu0 0.0
    %234 = vmatprep.subr.mxu0 0.0
    %235 = vmatpush1.xpose.msra.mxu0 0.0
    %236 = vmatprep.subr.mxu0 0.0
    %237 = vmatpush1.xpose.msra.mxu0 0.0
    %238 = vmatprep.subr.mxu0 0.0
    %239 = vmatpush1.xpose.msra.mxu0 0.0
    %240 = vmatprep.subr.mxu0 0.0
    %241 = vmatpush1.xpose.msra.mxu0 0.0
    %242 = vmatprep.mubr.f32.mxu0 0.0
    %243 = vmatmul.mubr.f32.gmra.mrb[0].mxu0 %v161
    %v244 = vpop.f32.mrb[0].mxu0
    %v245 = vadd.f32 0.0, %v244
    %v246 = vpop.f32.mrb[0].mxu0
    %247 = vmatprep.mubr.f32.mxu0 0.0
    %248 = vmatmul.mubr.f32.gmra.mrb[0].mxu0 %v164
    %v249 = vpop.f32.mrb[0].mxu0
    %v250 = vadd.f32 0.0, %v249
    %v251 = vpop.f32.mrb[0].mxu0
    %252 = vdwg.mxu0
    %v253 = vadd.f32 %v151, %v245
    %v254 = vadd.f32 %v152, %v250
    %255 = vst.msk [vmem:[#allocation13] sm:$0xff] %vm159, %v253
    %256 = vst.msk [vmem:[#allocation13 + $0x8] sm:$0xff] %vm159, %v254
    %v257 = vld [vmem:[#allocation14] sm:$0xff]
    %v258 = vld [vmem:[#allocation14 + $0x8] sm:$0xff]
    %v259 = vld [vmem:[#allocation5] sm:$0xff]
    %v260 = vld [vmem:[#allocation5 + $0x8] sm:$0xff]
    %v261 = vld [vmem:[#allocation10] sm:$0xff]
    %v262 = vld [vmem:[#allocation10 + $0x8] sm:$0xff]
    %v263 = vld [vmem:[#allocation10 + $0x10] sm:$0xff]
    %v264 = vld [vmem:[#allocation10 + $0x18] sm:$0xff]
    %v266 = vsel %vm159, %v259, 0
    %v269 = vsel %vm159, %v260, 0
    %v272 = vsel %vm159, %v261, 0
    %v275 = vsel %vm159, %v262, 0
    %v278 = vsel %vm159, %v263, 0
    %v281 = vsel %vm159, %v264, 0
    %283 = vmatprep.subr.mxu0 0.0
    %284 = vmatpush1.xpose.msra.mxu0 %v272
    %285 = vmatprep.subr.mxu0 0.0
    %286 = vmatpush1.xpose.msra.mxu0 %v275
    %287 = vmatprep.subr.mxu0 0.0
    %288 = vmatpush1.xpose.msra.mxu0 %v278
    %289 = vmatprep.subr.mxu0 0.0
    %290 = vmatpush1.xpose.msra.mxu0 %v281
    %291 = vmatprep.subr.mxu0 0.0
    %292 = vmatpush1.xpose.msra.mxu0 0.0
    %293 = vmatprep.subr.mxu0 0.0
    %294 = vmatpush1.xpose.msra.mxu0 0.0
    %295 = vmatprep.subr.mxu0 0.0
    %296 = vmatpush1.xpose.msra.mxu0 0.0
    %297 = vmatprep.subr.mxu0 0.0
    %298 = vmatpush1.xpose.msra.mxu0 0.0
    %299 = vmatprep.subr.mxu0 0.0
    %300 = vmatpush1.xpose.msra.mxu0 0.0
    %301 = vmatprep.subr.mxu0 0.0
    %302 = vmatpush1.xpose.msra.mxu0 0.0
    %303 = vmatprep.subr.mxu0 0.0
    %304 = vmatpush1.xpose.msra.mxu0 0.0
    %305 = vmatprep.subr.mxu0 0.0
    %306 = vmatpush1.xpose.msra.mxu0 0.0
    %307 = vmatprep.subr.mxu0 0.0
    %308 = vmatpush1.xpose.msra.mxu0 0.0
    %309 = vmatprep.subr.mxu0 0.0
    %310 = vmatpush1.xpose.msra.mxu0 0.0
    %311 = vmatprep.subr.mxu0 0.0
    %312 = vmatpush1.xpose.msra.mxu0 0.0
    %313 = vmatprep.subr.mxu0 0.0
    %314 = vmatpush1.xpose.msra.mxu0 0.0
    %315 = vmatprep.subr.mxu0 0.0
    %316 = vmatpush1.xpose.msra.mxu0 0.0
    %317 = vmatprep.subr.mxu0 0.0
    %318 = vmatpush1.xpose.msra.mxu0 0.0
    %319 = vmatprep.subr.mxu0 0.0
    %320 = vmatpush1.xpose.msra.mxu0 0.0
    %321 = vmatprep.subr.mxu0 0.0
    %322 = vmatpush1.xpose.msra.mxu0 0.0
    %323 = vmatprep.subr.mxu0 0.0
    %324 = vmatpush1.xpose.msra.mxu0 0.0
    %325 = vmatprep.subr.mxu0 0.0
    %326 = vmatpush1.xpose.msra.mxu0 0.0
    %327 = vmatprep.subr.mxu0 0.0
    %328 = vmatpush1.xpose.msra.mxu0 0.0
    %329 = vmatprep.subr.mxu0 0.0
    %330 = vmatpush1.xpose.msra.mxu0 0.0
    %331 = vmatprep.subr.mxu0 0.0
    %332 = vmatpush1.xpose.msra.mxu0 0.0
    %333 = vmatprep.subr.mxu0 0.0
    %334 = vmatpush1.xpose.msra.mxu0 0.0
    %335 = vmatprep.subr.mxu0 0.0
    %336 = vmatpush1.xpose.msra.mxu0 0.0
    %337 = vmatprep.subr.mxu0 0.0
    %338 = vmatpush1.xpose.msra.mxu0 0.0
    %339 = vmatprep.subr.mxu0 0.0
    %340 = vmatpush1.xpose.msra.mxu0 0.0
    %341 = vmatprep.subr.mxu0 0.0
    %342 = vmatpush1.xpose.msra.mxu0 0.0
    %343 = vmatprep.subr.mxu0 0.0
    %344 = vmatpush1.xpose.msra.mxu0 0.0
    %345 = vmatprep.subr.mxu0 0.0
    %346 = vmatpush1.xpose.msra.mxu0 0.0
    %347 = vmatprep.mubr.f32.mxu0 0.0
    %348 = vmatmul.mubr.f32.gmra.mrb[0].mxu0 %v266
    %v349 = vpop.f32.mrb[0].mxu0
    %v350 = vadd.f32 0.0, %v349
    %v351 = vpop.f32.mrb[0].mxu0
    %352 = vmatprep.mubr.f32.mxu0 0.0
    %353 = vmatmul.mubr.f32.gmra.mrb[0].mxu0 %v269
    %v354 = vpop.f32.mrb[0].mxu0
    %v355 = vadd.f32 0.0, %v354
    %v356 = vpop.f32.mrb[0].mxu0
    %357 = vdwg.mxu0
    %v358 = vadd.f32 %v257, %v350
    %v359 = vadd.f32 %v258, %v355
    %360 = vst.msk [vmem:[#allocation14] sm:$0xff] %vm159, %v358
    %361 = vst.msk [vmem:[#allocation14 + $0x8] sm:$0xff] %vm159, %v359
    %v362 = vld [vmem:[#allocation16] sm:$0xff]
    %v363 = vld [vmem:[#allocation16 + $0x8] sm:$0xff]
    %v364 = vld [vmem:[#allocation7] sm:$0xff]
    %v365 = vld [vmem:[#allocation7 + $0x8] sm:$0xff]
    %v366 = vld [vmem:[#allocation11] sm:$0xff]
    %v367 = vld [vmem:[#allocation11 + $0x8] sm:$0xff]
    %v368 = vld [vmem:[#allocation11 + $0x10] sm:$0xff]
    %v369 = vld [vmem:[#allocation11 + $0x18] sm:$0xff]
    %v371 = vsel %vm159, %v364, 0
    %v374 = vsel %vm159, %v365, 0
    %v377 = vsel %vm159, %v366, 0
    %v380 = vsel %vm159, %v367, 0
    %v383 = vsel %vm159, %v368, 0
    %v386 = vsel %vm159, %v369, 0
    %388 = vmatprep.subr.mxu0 0.0
    %389 = vmatpush1.xpose.msra.mxu0 %v377
    %390 = vmatprep.subr.mxu0 0.0
    %391 = vmatpush1.xpose.msra.mxu0 %v380
    %392 = vmatprep.subr.mxu0 0.0
    %393 = vmatpush1.xpose.msra.mxu0 %v383
    %394 = vmatprep.subr.mxu0 0.0
    %395 = vmatpush1.xpose.msra.mxu0 %v386
    %396 = vmatprep.subr.mxu0 0.0
    %397 = vmatpush1.xpose.msra.mxu0 0.0
    %398 = vmatprep.subr.mxu0 0.0
    %399 = vmatpush1.xpose.msra.mxu0 0.0
    %400 = vmatprep.subr.mxu0 0.0
    %401 = vmatpush1.xpose.msra.mxu0 0.0
    %402 = vmatprep.subr.mxu0 0.0
    %403 = vmatpush1.xpose.msra.mxu0 0.0
    %404 = vmatprep.subr.mxu0 0.0
    %405 = vmatpush1.xpose.msra.mxu0 0.0
    %406 = vmatprep.subr.mxu0 0.0
    %407 = vmatpush1.xpose.msra.mxu0 0.0
    %408 = vmatprep.subr.mxu0 0.0
    %409 = vmatpush1.xpose.msra.mxu0 0.0
    %410 = vmatprep.subr.mxu0 0.0
    %411 = vmatpush1.xpose.msra.mxu0 0.0
    %412 = vmatprep.subr.mxu0 0.0
    %413 = vmatpush1.xpose.msra.mxu0 0.0
    %414 = vmatprep.subr.mxu0 0.0
    %415 = vmatpush1.xpose.msra.mxu0 0.0
    %416 = vmatprep.subr.mxu0 0.0
    %417 = vmatpush1.xpose.msra.mxu0 0.0
    %418 = vmatprep.subr.mxu0 0.0
    %419 = vmatpush1.xpose.msra.mxu0 0.0
    %420 = vmatprep.subr.mxu0 0.0
    %421 = vmatpush1.xpose.msra.mxu0 0.0
    %422 = vmatprep.subr.mxu0 0.0
    %423 = vmatpush1.xpose.msra.mxu0 0.0
    %424 = vmatprep.subr.mxu0 0.0
    %425 = vmatpush1.xpose.msra.mxu0 0.0
    %426 = vmatprep.subr.mxu0 0.0
    %427 = vmatpush1.xpose.msra.mxu0 0.0
    %428 = vmatprep.subr.mxu0 0.0
    %429 = vmatpush1.xpose.msra.mxu0 0.0
    %430 = vmatprep.subr.mxu0 0.0
    %431 = vmatpush1.xpose.msra.mxu0 0.0
    %432 = vmatprep.subr.mxu0 0.0
    %433 = vmatpush1.xpose.msra.mxu0 0.0
    %434 = vmatprep.subr.mxu0 0.0
    %435 = vmatpush1.xpose.msra.mxu0 0.0
    %436 = vmatprep.subr.mxu0 0.0
    %437 = vmatpush1.xpose.msra.mxu0 0.0
    %438 = vmatprep.subr.mxu0 0.0
    %439 = vmatpush1.xpose.msra.mxu0 0.0
    %440 = vmatprep.subr.mxu0 0.0
    %441 = vmatpush1.xpose.msra.mxu0 0.0
    %442 = vmatprep.subr.mxu0 0.0
    %443 = vmatpush1.xpose.msra.mxu0 0.0
    %444 = vmatprep.subr.mxu0 0.0
    %445 = vmatpush1.xpose.msra.mxu0 0.0
    %446 = vmatprep.subr.mxu0 0.0
    %447 = vmatpush1.xpose.msra.mxu0 0.0
    %448 = vmatprep.subr.mxu0 0.0
    %449 = vmatpush1.xpose.msra.mxu0 0.0
    %450 = vmatprep.subr.mxu0 0.0
    %451 = vmatpush1.xpose.msra.mxu0 0.0
    %452 = vmatprep.mubr.f32.mxu0 0.0
    %453 = vmatmul.mubr.f32.gmra.mrb[0].mxu0 %v371
    %v454 = vpop.f32.mrb[0].mxu0
    %v455 = vadd.f32 0.0, %v454
    %v456 = vpop.f32.mrb[0].mxu0
    %457 = vmatprep.mubr.f32.mxu0 0.0
    %458 = vmatmul.mubr.f32.gmra.mrb[0].mxu0 %v374
    %v459 = vpop.f32.mrb[0].mxu0
    %v460 = vadd.f32 0.0, %v459
    %v461 = vpop.f32.mrb[0].mxu0
    %462 = vdwg.mxu0
    %v463 = vadd.f32 %v362, %v455
    %v464 = vadd.f32 %v363, %v460
    %465 = vst.msk [vmem:[#allocation16] sm:$0xff] %vm159, %v463
    %466 = vst.msk [vmem:[#allocation16 + $0x8] sm:$0xff] %vm159, %v464
    // Predicated region
    $region66: #{tpu_custom_call.1} parent=1 // pred_check
      %p467 = pneg %p119
    $region67: #{tpu_custom_call.1} parent=1 // pred_check_branch
      %469 = sbr.rel (%p467) target = $region69
    $region68: #{tpu_custom_call.1} parent=1 // pred_region
      %v470 = vld [vmem:[#allocation13] sm:$0xff]
      %v471 = vld [vmem:[#allocation13 + $0x8] sm:$0xff]
      %v472 = vmul.f32 %v470, 0.35355338
      %v473 = vmul.f32 %v471, 0.35355338
      %474 = vst.msk [vmem:[#allocation13] sm:$0xff] %vm159, %v472
      %475 = vst.msk [vmem:[#allocation13 + $0x8] sm:$0xff] %vm159, %v473
    $region69: #{tpu_custom_call.1} parent=1 // pred_fallthru
      _
    // Predicated region
    $region70: #{tpu_custom_call.1} parent=1 // pred_check
      _
    $region71: #{tpu_custom_call.1} parent=1 // pred_check_branch
      %477 = sbr.rel (0) target = $region73
    $region72: #{tpu_custom_call.1} parent=1 // pred_region
      %s479 = ssub.s32 256, 256
      %480 = vsyncadd [#allocation4], %s479
      %s481 = sshll.u32 [#allocation13], 4
      %s482 = int_to_ptr.vmem [resolvable:$true] %s481
      %487 = dma.vmem_to_hbm [thread:$0]  %s482, 256, %s9, [#allocation4], 128, 128, 8
    $region73: #{tpu_custom_call.1} parent=1 // pred_fallthru
      _
    // Predicated region
    $region74: #{tpu_custom_call.1} parent=1 // pred_check
      _
    $region75: #{tpu_custom_call.1} parent=1 // pred_check_branch
      %489 = sbr.rel (0) target = $region77
    $region76: #{tpu_custom_call.1} parent=1 // pred_region
      %s491 = ssub.s32 256, 256
      %492 = vsyncadd [#allocation15], %s491
      %s493 = sshll.u32 [#allocation14], 4
      %s494 = int_to_ptr.vmem [resolvable:$true] %s493
      %499 = dma.vmem_to_hbm [thread:$0]  %s494, 256, %s10, [#allocation15], 128, 128, 8
    $region77: #{tpu_custom_call.1} parent=1 // pred_fallthru
      _
    // Predicated region
    $region78: #{tpu_custom_call.1} parent=1 // pred_check
      _
    $region79: #{tpu_custom_call.1} parent=1 // pred_check_branch
      %501 = sbr.rel (0) target = $region81
    $region80: #{tpu_custom_call.1} parent=1 // pred_region
      %s503 = ssub.s32 256, 256
      %504 = vsyncadd [#allocation15], %s503
      %s505 = sshll.u32 [#allocation16], 4
      %s506 = int_to_ptr.vmem [resolvable:$true] %s505
      %511 = dma.vmem_to_hbm [thread:$0]  %s506, 256, %s11, [#allocation15], 128, 128, 8
    $region81: #{tpu_custom_call.1} parent=1 // pred_fallthru
      _
    // Predicated region
    $region82: #{tpu_custom_call.1} parent=1 // pred_check
      _
    $region83: #{tpu_custom_call.1} parent=1 // pred_check_branch
      %513 = sbr.rel (0) target = $region85
    $region84: #{tpu_custom_call.1} parent=1 // pred_region
      %514 = dma.done [#allocation4], 256
    $region85: #{tpu_custom_call.1} parent=1 // pred_fallthru
      _
    // Predicated region
    $region86: #{tpu_custom_call.1} parent=1 // pred_check
      _
    $region87: #{tpu_custom_call.1} parent=1 // pred_check_branch
      %516 = sbr.rel (0) target = $region89
    $region88: #{tpu_custom_call.1} parent=1 // pred_region
      %517 = dma.done [#allocation15], 256
    $region89: #{tpu_custom_call.1} parent=1 // pred_fallthru
      _
    // Predicated region
    $region90: #{tpu_custom_call.1} parent=1 // pred_check
      _
    $region91: #{tpu_custom_call.1} parent=1 // pred_check_branch
      %519 = sbr.rel (0) target = $region93
    $region92: #{tpu_custom_call.1} parent=1 // pred_region
      %520 = dma.done [#allocation15], 256
    $region93: #{tpu_custom_call.1} parent=1 // pred_fallthru
      _
    %521 = vsyncpa [#allocation3], 1
    %522 = vsyncpa [#allocation6], 1
    %523 = vsyncpa [#allocation9], 1
    %524 = vsyncpa [#allocation12], 1
    %525 = vsyncpa [#allocation4], 1
    %526 = vsyncpa [#allocation15], 1

</llo_original>
